<compile_context>
chip_gen: v7x
topology: tpu7x:2x2x1
jax: 0.10.0
libtpu: 0.0.40
codegen_flags: <defaults>
</compile_context>

<pallas_src>
import functools
import math

import jax
import jax.numpy as jnp
from jax import lax
from jax.experimental import pallas as pl
from jax.experimental.pallas import tpu as pltpu

_NEG_LARGE = -1e30  # effectively -inf for padded vocab columns (exp -> 0)


def _round_up(a: int, b: int) -> int:
    return (a + b - 1) // b * b


def _default_vmem_limit() -> int:
    """~75% of the per-core VMEM, capped at 100 MiB; 48 MiB if unknown."""
    try:
        cap = int(pltpu.get_tpu_info().vmem_capacity_bytes)
    except Exception:
        cap = 64 * 1024 * 1024          # conservative (v7x-sized) fallback
    return max(32 * 1024 * 1024, min(int(cap * 3 // 4), 100 * 1024 * 1024))


# --------------------------------------------------------------------------
# Kernels
# --------------------------------------------------------------------------

def _single_pass_kernel(x_ref, w_ref, b_ref, o_ref, logits_sc, m_sc, l_sc,
                        *, nvt, tv):
    """Row tile resident; one sweep over vocab tiles; logits slab in VMEM.

    x_ref: (TM, D) compute dtype     w_ref: (TV, D) compute dtype
    b_ref: (1, TV) f32               o_ref: (TM, V_pad) out dtype
    logits_sc: (nvt, TM, TV) f32     m_sc / l_sc: (TM, 1) f32
    """
    v = pl.program_id(1)

    @pl.when(v == 0)
    def _init():
        m_sc[...] = jnp.full(m_sc.shape, _NEG_LARGE, dtype=m_sc.dtype)
        l_sc[...] = jnp.zeros(l_sc.shape, dtype=l_sc.dtype)

    # x (TM, D) @ W^T (D, TV) -> (TM, TV); f32 accumulation on the MXU.
    logits = lax.dot_general(
        x_ref[...], w_ref[...],
        dimension_numbers=(((1,), (1,)), ((), ())),
        preferred_element_type=jnp.float32) + b_ref[...]

    # Online softmax statistics (VPU/EUP work hidden under the MXU).
    m_new = jnp.maximum(m_sc[...], jnp.max(logits, axis=-1, keepdims=True))
    l_sc[...] = (l_sc[...] * jnp.exp(m_sc[...] - m_new)
                 + jnp.sum(jnp.exp(logits - m_new), axis=-1, keepdims=True))
    m_sc[...] = m_new

    # Stash this vocab tile in the VMEM-resident row slab.
    logits_sc[v] = logits

    @pl.when(v == nvt - 1)
    def _finalize():
        lse = m_sc[...] + jnp.log(l_sc[...])
        for t in range(nvt):                       # static unroll, lane-dense stores
            o_ref[:, t * tv:(t + 1) * tv] = (logits_sc[t] - lse).astype(o_ref.dtype)


def _stats_logits_kernel(x_ref, w_ref, b_ref, logits_ref, lse_ref, m_sc, l_sc,
                         *, nvt):
    """Large-vocab pass 1: unnormalized f32 logits tiles + per-row lse."""
    v = pl.program_id(1)

    @pl.when(v == 0)
    def _init():
        m_sc[...] = jnp.full(m_sc.shape, _NEG_LARGE, dtype=m_sc.dtype)
        l_sc[...] = jnp.zeros(l_sc.shape, dtype=l_sc.dtype)

    logits = lax.dot_general(
        x_ref[...], w_ref[...],
        dimension_numbers=(((1,), (1,)), ((), ())),
        preferred_element_type=jnp.float32) + b_ref[...]
    logits_ref[...] = logits

    m_new = jnp.maximum(m_sc[...], jnp.max(logits, axis=-1, keepdims=True))
    l_sc[...] = (l_sc[...] * jnp.exp(m_sc[...] - m_new)
                 + jnp.sum(jnp.exp(logits - m_new), axis=-1, keepdims=True))
    m_sc[...] = m_new

    @pl.when(v == nvt - 1)
    def _write_lse():
        lse_ref[...] = m_sc[...] + jnp.log(l_sc[...])


def _normalize_kernel(logits_ref, lse_ref, o_ref):
    """Large-vocab pass 2: trivially mem-bound normalization."""
    o_ref[...] = (logits_ref[...] - lse_ref[...]).astype(o_ref.dtype)


# --------------------------------------------------------------------------
# Wrapper
# --------------------------------------------------------------------------

def generator_forward(x, weight, bias, *, row_tile=256, vocab_tile=None,
                      compute_dtype=jnp.bfloat16, out_dtype=None,
                      single_pass=None, vmem_limit_bytes=None):
    """log_softmax(x @ weight.T + bias, axis=-1).

    x: [..., d_model]; weight: [vocab, d_model] (PyTorch nn.Linear layout,
    never transposed in the wrapper); bias: [vocab].
    """
    *lead, D = x.shape
    V, Dw = weight.shape
    assert Dw == D, "weight must be (vocab, d_model)"
    N = math.prod(lead) if lead else 1

    compute_dtype = jnp.dtype(compute_dtype) if compute_dtype is not None else x.dtype
    out_dtype = jnp.dtype(out_dtype) if out_dtype is not None else x.dtype
    c_isz = jnp.dtype(compute_dtype).itemsize
    o_isz = jnp.dtype(out_dtype).itemsize

    vmem_limit = int(vmem_limit_bytes) if vmem_limit_bytes else _default_vmem_limit()

    # --- row tiles: big (weight is re-streamed once per row tile), but keep
    # --- >= 2 row tiles where N allows so v7x's two TensorCores both work.
    TM = max(8, min(_round_up(int(row_tile), 8), _round_up(N, 8)))
    N_pad = _round_up(N, TM)
    while N_pad // TM < 2 and TM > 8:
        TM = max(8, _round_up(TM // 2, 8))
        N_pad = _round_up(N, TM)
    nrt = N_pad // TM

    # --- vocab tiles: size the double-buffered (TV, D) weight tiles to ~1/3
    # --- of the VMEM budget -> long DMAs, low per-grid-step overhead.
    V128 = _round_up(V, 128)
    if vocab_tile is None:
        tv = (vmem_limit // 3) // max(1, 2 * D * c_isz)
        tv = max(128, min(8192, (tv // 128) * 128))
    else:
        tv = max(128, _round_up(int(vocab_tile), 128))
    TV = min(tv, V128)
    V_pad = _round_up(V, TV)
    nvt = V_pad // TV

    # --- pad & cast operands (no transpose of the weight) --------------------
    x2 = x.reshape(N, D)
    if N_pad != N:
        x2 = jnp.pad(x2, ((0, N_pad - N), (0, 0)))
    x2 = x2.astype(compute_dtype)

    w = weight
    if V_pad != V:
        w = jnp.pad(w, ((0, V_pad - V), (0, 0)))
    w = w.astype(compute_dtype)        # no-op if the caller pre-casts the weight

    b2 = bias.astype(jnp.float32).reshape(1, V)
    if V_pad != V:
        # padded vocab columns get a -1e30 bias -> exp() == 0 in the softmax
        b2 = jnp.pad(b2, ((0, 0), (0, V_pad - V)), constant_values=_NEG_LARGE)

    # --- single-pass (VMEM-resident logits slab) vs two-pass decision --------
    est_single = (2 * TM * D * c_isz          # x row tile (double-buffered)
                  + 2 * TV * D * c_isz        # weight tiles (double-buffered)
                  + 2 * TV * 4                # bias tiles
                  + TM * V_pad * 4            # f32 logits slab scratch
                  + 2 * TM * V_pad * o_isz    # output row-slab buffers
                  + 8 * TM * 4)               # m/l stats
    if single_pass is None:
        single_pass = est_single <= int(0.85 * vmem_limit)

    cparams = pltpu.CompilerParams(
        dimension_semantics=("parallel", "arbitrary"),
        vmem_limit_bytes=vmem_limit)

    if single_pass:
        cost = pl.CostEstimate(
            flops=2 * N_pad * D * V_pad,
            transcendentals=N_pad * V_pad,
            bytes_accessed=(N_pad * D * c_isz + nrt * V_pad * D * c_isz
                            + V_pad * 4 + N_pad * V_pad * o_isz))
        out = pl.pallas_call(
            functools.partial(_single_pass_kernel, nvt=nvt, tv=TV),
            out_shape=jax.ShapeDtypeStruct((N_pad, V_pad), out_dtype),
            grid=(nrt, nvt),
            in_specs=[
                pl.BlockSpec((TM, D), lambda i, v: (i, 0)),   # x row tile (resident)
                pl.BlockSpec((TV, D), lambda i, v: (v, 0)),   # weight vocab tile
                pl.BlockSpec((1, TV), lambda i, v: (0, v)),   # bias vocab tile
            ],
            out_specs=pl.BlockSpec((TM, V_pad), lambda i, v: (i, 0)),  # written at last v
            scratch_shapes=[
                pltpu.VMEM((nvt, TM, TV), jnp.float32),   # logits row slab
                pltpu.VMEM((TM, 1), jnp.float32),         # running max m
                pltpu.VMEM((TM, 1), jnp.float32),         # running sum-of-exp l
            ],
            compiler_params=cparams,
            cost_estimate=cost,
        )(x2, w, b2)
    else:
        # Pass 1: unnormalized f32 logits + per-row lse.
        cost1 = pl.CostEstimate(
            flops=2 * N_pad * D * V_pad,
            transcendentals=N_pad * V_pad,
            bytes_accessed=(N_pad * D * c_isz + nrt * V_pad * D * c_isz
                            + V_pad * 4 + N_pad * V_pad * 4 + N_pad * 4))
        logits, lse = pl.pallas_call(
            functools.partial(_stats_logits_kernel, nvt=nvt),
            out_shape=(jax.ShapeDtypeStruct((N_pad, V_pad), jnp.float32),
                       jax.ShapeDtypeStruct((N_pad, 1), jnp.float32)),
            grid=(nrt, nvt),
            in_specs=[
                pl.BlockSpec((TM, D), lambda i, v: (i, 0)),
                pl.BlockSpec((TV, D), lambda i, v: (v, 0)),
                pl.BlockSpec((1, TV), lambda i, v: (0, v)),
            ],
            out_specs=(pl.BlockSpec((TM, TV), lambda i, v: (i, v)),
                       pl.BlockSpec((TM, 1), lambda i, v: (i, 0))),
            scratch_shapes=[pltpu.VMEM((TM, 1), jnp.float32),
                            pltpu.VMEM((TM, 1), jnp.float32)],
            compiler_params=cparams,
            cost_estimate=cost1,
        )(x2, w, b2)

        # Pass 2: cheap elementwise normalization (reads logits back once).
        cost2 = pl.CostEstimate(
            flops=N_pad * V_pad, transcendentals=0,
            bytes_accessed=N_pad * V_pad * (4 + o_isz) + N_pad * 4)
        out = pl.pallas_call(
            _normalize_kernel,
            out_shape=jax.ShapeDtypeStruct((N_pad, V_pad), out_dtype),
            grid=(nrt, nvt),
            in_specs=[pl.BlockSpec((TM, TV), lambda i, v: (i, v)),
                      pl.BlockSpec((TM, 1), lambda i, v: (i, 0))],
            out_specs=pl.BlockSpec((TM, TV), lambda i, v: (i, v)),
            compiler_params=pltpu.CompilerParams(
                dimension_semantics=("parallel", "parallel"),
                vmem_limit_bytes=vmem_limit),
            cost_estimate=cost2,
        )(logits, lse)

    out = out[:N, :V]
    return out.reshape(*lead, V)


# --------------------------------------------------------------------------
# Self-test
# --------------------------------------------------------------------------

if __name__ == "__main__":
    key = jax.random.PRNGKey(0)
    kx, kw, kb = jax.random.split(key, 3)

    # --- main check: batch=2, seq=8, d_model=128, vocab=512 ------------------
    B, S, D, V = 2, 8, 128, 512
    x = jax.random.normal(kx, (B, S, D), dtype=jnp.float32)
    weight = jax.random.normal(kw, (V, D), dtype=jnp.float32) * 0.05
    bias = jax.random.normal(kb, (V,), dtype=jnp.float32) * 0.01
    ref = jax.nn.log_softmax(x @ weight.T + bias, axis=-1)

    # f32 compute path (tight tolerance)
    out_f32 = jax.block_until_ready(
        generator_forward(x, weight, bias, compute_dtype=jnp.float32))
    assert out_f32.shape == (B, S, V)
    assert jnp.allclose(out_f32, ref, atol=1e-4, rtol=1e-4), "f32 mismatch"

    # default path: bf16 matmul inputs, f32 accumulation
    out_def = jax.block_until_ready(generator_forward(x, weight, bias))
    assert jnp.allclose(out_def, ref, atol=5e-2, rtol=5e-2), "bf16 path mismatch"

    # --- single-pass online accumulation across multiple vocab tiles ---------
    out_mt = jax.block_until_ready(
        generator_forward(x, weight, bias, vocab_tile=128,
                          compute_dtype=jnp.float32))
    assert jnp.allclose(out_mt, ref, atol=1e-4, rtol=1e-4), "vocab-tiled mismatch"

    # --- large-vocab fallback: write logits + lse, then normalize pass -------
    out_2p = jax.block_until_ready(
        generator_forward(x, weight, bias, vocab_tile=128,
                          compute_dtype=jnp.float32, single_pass=False))
    assert jnp.allclose(out_2p, ref, atol=1e-4, rtol=1e-4), "two-pass mismatch"

    # --- bf16 output (halved writeback), looser tolerance ---------------------
    out_bf16o = jax.block_until_ready(
        generator_forward(x, weight, bias, out_dtype=jnp.bfloat16))
    assert jnp.allclose(out_bf16o.astype(jnp.float32), ref,
                        atol=1e-1, rtol=1e-1), "bf16-out mismatch"

    # --- padding path: N and V not multiples of the tiles ---------------------
    B3, S3, D3, V3 = 3, 5, 64, 200
    x3 = jax.random.normal(kx, (B3, S3, D3), dtype=jnp.float32)
    w3 = jax.random.normal(kw, (V3, D3), dtype=jnp.float32) * 0.05
    b3 = jax.random.normal(kb, (V3,), dtype=jnp.float32) * 0.01
    ref3 = jax.nn.log_softmax(x3 @ w3.T + b3, axis=-1)
    out3 = jax.block_until_ready(generator_forward(x3, w3, b3))
    assert out3.shape == (B3, S3, V3)
    assert jnp.allclose(out3, ref3, atol=5e-2, rtol=5e-2), "padded mismatch"

    print("KERNEL_OK")
</pallas_src>

<mosaic_0001>
module attributes {stable_mosaic.version = 11 : i64} {
  func.func @_single_pass_kernel(%arg0: i32, %arg1: i32, %arg2: memref<8x128xf32, #tpu.memory_space<vmem>>, %arg3: memref<512x128xf32, #tpu.memory_space<vmem>>, %arg4: memref<1x512xf32, #tpu.memory_space<vmem>>, %arg5: memref<8x512xf32, #tpu.memory_space<vmem>>, %arg6: memref<1x8x512xf32, #tpu.memory_space<vmem>>, %arg7: memref<8x1xf32, #tpu.memory_space<vmem>>, %arg8: memref<8x1xf32, #tpu.memory_space<vmem>>) attributes {dimension_semantics = [#tpu.dimension_semantics<parallel>, #tpu.dimension_semantics<arbitrary>], iteration_bounds = array<i64: 2, 1>, scalar_prefetch = 0 : i64, scratch_operands = 3 : i64, tpu.core_type = #tpu.core_type<tc>, window_params = [{transform_indices = @transform_0, window_bounds = array<i64: 8, 128>}, {transform_indices = @transform_1, window_bounds = array<i64: 512, 128>}, {transform_indices = @transform_2, window_bounds = array<i64: 1, 512>}, {transform_indices = @transform_3, window_bounds = array<i64: 8, 512>}]} {
    %c0_i32 = arith.constant 0 : i32
    %0 = arith.cmpi eq, %arg1, %c0_i32 : i32
    %1 = arith.extui %0 : i1 to i32
    %c0_i32_0 = arith.constant 0 : i32
    %2 = arith.cmpi ne, %1, %c0_i32_0 : i32
    scf.if %2 {
      %cst_22 = arith.constant -1.000000e+30 : f32
      %33 = vector.broadcast %cst_22 : f32 to vector<8x1xf32>
      %c0_23 = arith.constant 0 : index
      %c0_24 = arith.constant 0 : index
      %34 = vector.load %arg7[%c0_23, %c0_24] : memref<8x1xf32, #tpu.memory_space<vmem>>, vector<8x1xf32>
      tpu.vector_store %arg7[%c0_23, %c0_24], %33 {strides = array<i32>} : memref<8x1xf32, #tpu.memory_space<vmem>>, vector<8x1xf32>,
      %cst_25 = arith.constant 0.000000e+00 : f32
      %35 = vector.broadcast %cst_25 : f32 to vector<8x1xf32>
      %c0_26 = arith.constant 0 : index
      %c0_27 = arith.constant 0 : index
      %36 = vector.load %arg8[%c0_26, %c0_27] : memref<8x1xf32, #tpu.memory_space<vmem>>, vector<8x1xf32>
      tpu.vector_store %arg8[%c0_26, %c0_27], %35 {strides = array<i32>} : memref<8x1xf32, #tpu.memory_space<vmem>>, vector<8x1xf32>,
    } else {
    }
    %c0 = arith.constant 0 : index
    %c0_1 = arith.constant 0 : index
    %3 = vector.load %arg2[%c0, %c0_1] : memref<8x128xf32, #tpu.memory_space<vmem>>, vector<8x128xf32>
    %c0_2 = arith.constant 0 : index
    %c0_3 = arith.constant 0 : index
    %4 = vector.load %arg3[%c0_2, %c0_3] : memref<512x128xf32, #tpu.memory_space<vmem>>, vector<512x128xf32>
    %cst = arith.constant dense<0.000000e+00> : vector<8x512xf32>
    %5 = tpu.matmul %3, %4, %cst {dimension_numbers = #tpu.dot_dimension_numbers<[1], [1], [0], [0], [0, 0, 1, 0], [], []>} : vector<8x128xf32>, vector<512x128xf32>, vector<8x512xf32> -> vector<8x512xf32>
    %c0_4 = arith.constant 0 : index
    %c0_5 = arith.constant 0 : index
    %6 = vector.load %arg4[%c0_4, %c0_5] : memref<1x512xf32, #tpu.memory_space<vmem>>, vector<1x512xf32>
    %7 = vector.broadcast %6 : vector<1x512xf32> to vector<8x512xf32>
    %8 = arith.addf %5, %7 : vector<8x512xf32>
    %c0_6 = arith.constant 0 : index
    %c0_7 = arith.constant 0 : index
    %9 = vector.load %arg7[%c0_6, %c0_7] : memref<8x1xf32, #tpu.memory_space<vmem>>, vector<8x1xf32>
    %cst_8 = arith.constant dense<0xFF800000> : vector<8xf32>
    %10 = vector.multi_reduction <maximumf>, %8, %cst_8 [1] : vector<8x512xf32> to vector<8xf32>
    %11 = vector.shape_cast %10 : vector<8xf32> to vector<8x1xf32>
    %12 = arith.maximumf %9, %11 : vector<8x1xf32>
    %c0_9 = arith.constant 0 : index
    %c0_10 = arith.constant 0 : index
    %13 = vector.load %arg8[%c0_9, %c0_10] : memref<8x1xf32, #tpu.memory_space<vmem>>, vector<8x1xf32>
    %c0_11 = arith.constant 0 : index
    %c0_12 = arith.constant 0 : index
    %14 = vector.load %arg7[%c0_11, %c0_12] : memref<8x1xf32, #tpu.memory_space<vmem>>, vector<8x1xf32>
    %15 = arith.subf %14, %12 : vector<8x1xf32>
    %16 = math.exp %15 : vector<8x1xf32>
    %17 = arith.mulf %13, %16 : vector<8x1xf32>
    %18 = vector.broadcast %12 : vector<8x1xf32> to vector<8x512xf32>
    %19 = arith.subf %8, %18 : vector<8x512xf32>
    %20 = math.exp %19 : vector<8x512xf32>
    %cst_13 = arith.constant dense<0.000000e+00> : vector<8xf32>
    %21 = vector.multi_reduction <add>, %20, %cst_13 [1] : vector<8x512xf32> to vector<8xf32>
    %22 = vector.shape_cast %21 : vector<8xf32> to vector<8x1xf32>
    %23 = arith.addf %17, %22 : vector<8x1xf32>
    %c0_14 = arith.constant 0 : index
    %c0_15 = arith.constant 0 : index
    %24 = vector.load %arg8[%c0_14, %c0_15] : memref<8x1xf32, #tpu.memory_space<vmem>>, vector<8x1xf32>
    tpu.vector_store %arg8[%c0_14, %c0_15], %23 {strides = array<i32>} : memref<8x1xf32, #tpu.memory_space<vmem>>, vector<8x1xf32>,
    %c0_16 = arith.constant 0 : index
    %c0_17 = arith.constant 0 : index
    %25 = vector.load %arg7[%c0_16, %c0_17] : memref<8x1xf32, #tpu.memory_space<vmem>>, vector<8x1xf32>
    tpu.vector_store %arg7[%c0_16, %c0_17], %12 {strides = array<i32>} : memref<8x1xf32, #tpu.memory_space<vmem>>, vector<8x1xf32>,
    %26 = arith.index_cast %arg1 : i32 to index
    %c0_18 = arith.constant 0 : index
    %c0_19 = arith.constant 0 : index
    %27 = vector.load %arg6[%26, %c0_18, %c0_19] : memref<1x8x512xf32, #tpu.memory_space<vmem>>, vector<1x8x512xf32>
    %28 = vector.shape_cast %27 : vector<1x8x512xf32> to vector<8x512xf32>
    %29 = vector.shape_cast %8 : vector<8x512xf32> to vector<1x8x512xf32>
    tpu.vector_store %arg6[%26, %c0_18, %c0_19], %29 {strides = array<i32>} : memref<1x8x512xf32, #tpu.memory_space<vmem>>, vector<1x8x512xf32>,
    %c0_i32_20 = arith.constant 0 : i32
    %30 = arith.cmpi eq, %arg1, %c0_i32_20 : i32
    %31 = arith.extui %30 : i1 to i32
    %c0_i32_21 = arith.constant 0 : i32
    %32 = arith.cmpi ne, %31, %c0_i32_21 : i32
    scf.if %32 {
      %c0_22 = arith.constant 0 : index
      %c0_23 = arith.constant 0 : index
      %33 = vector.load %arg7[%c0_22, %c0_23] : memref<8x1xf32, #tpu.memory_space<vmem>>, vector<8x1xf32>
      %c0_24 = arith.constant 0 : index
      %c0_25 = arith.constant 0 : index
      %34 = vector.load %arg8[%c0_24, %c0_25] : memref<8x1xf32, #tpu.memory_space<vmem>>, vector<8x1xf32>
      %35 = math.log %34 : vector<8x1xf32>
      %36 = arith.addf %33, %35 : vector<8x1xf32>
      %c0_26 = arith.constant 0 : index
      %c0_27 = arith.constant 0 : index
      %c0_28 = arith.constant 0 : index
      %37 = vector.load %arg6[%c0_26, %c0_27, %c0_28] : memref<1x8x512xf32, #tpu.memory_space<vmem>>, vector<1x8x512xf32>
      %38 = vector.shape_cast %37 : vector<1x8x512xf32> to vector<8x512xf32>
      %39 = vector.broadcast %36 : vector<8x1xf32> to vector<8x512xf32>
      %40 = arith.subf %38, %39 : vector<8x512xf32>
      %c0_29 = arith.constant 0 : index
      %c0_30 = arith.constant 0 : index
      %41 = vector.load %arg5[%c0_29, %c0_30] : memref<8x512xf32, #tpu.memory_space<vmem>>, vector<8x512xf32>
      tpu.vector_store %arg5[%c0_29, %c0_30], %40 {strides = array<i32>} : memref<8x512xf32, #tpu.memory_space<vmem>>, vector<8x512xf32>,
    } else {
    }
    return
  }
  func.func @transform_0(%arg0: i32, %arg1: i32) -> (i32, i32) {
    %c0_i32 = arith.constant 0 : i32
    %c0_i32_0 = arith.constant 0 : i32
    return %arg0, %c0_i32 : i32, i32
  }
  func.func @transform_1(%arg0: i32, %arg1: i32) -> (i32, i32) {
    %c0_i32 = arith.constant 0 : i32
    %c0_i32_0 = arith.constant 0 : i32
    return %arg1, %c0_i32 : i32, i32
  }
  func.func @transform_2(%arg0: i32, %arg1: i32) -> (i32, i32) {
    %c0_i32 = arith.constant 0 : i32
    %c0_i32_0 = arith.constant 0 : i32
    return %c0_i32, %arg1 : i32, i32
  }
  func.func @transform_3(%arg0: i32, %arg1: i32) -> (i32, i32) {
    %c0_i32 = arith.constant 0 : i32
    %c0_i32_0 = arith.constant 0 : i32
    return %arg0, %c0_i32 : i32, i32
  }
}

</mosaic_0001>

<llo_original>
// kernel: tpu_custom_call.1
$region0: #{tpu_custom_call.1}
  #allocation0 [shape = 'u32[]', space=smem, size = 0x4, offset = 0x4, fixed_abs, tag = 'smem constant byte address 0x4 - core index']
  #allocation1 [shape = 'u32[144,128]{1,0:T(1,128)}', space=vmem, size = 0x12000, scoped, tag = 'internal scratch']
  #allocation2 [shape = 'f32[1,8,512]{2,1,0:T(8,128)}', space=vmem, size = 0x4000, scoped, tag = 'scratch operand']
  #allocation3 [shape = 'f32[8,1]{1,0:T(8,128)}', space=vmem, size = 0x1000, scoped, tag = 'scratch operand']
  #allocation4 [shape = 'f32[8,1]{1,0:T(8,128)}', space=vmem, size = 0x1000, scoped, tag = 'scratch operand']
  %s0 = inlined_call_operand.hbm [shape: f32[16,128], index: 0, kind: input, shape index: {}]
  %s1 = inlined_call_operand.hbm [shape: f32[512,128], index: 1, kind: input, shape index: {}]
  %s2 = inlined_call_operand.vmem [shape: f32[1,512], index: 2, kind: input, shape index: {}]
  %s3 = inlined_call_operand.hbm [shape: f32[16,512], index: 3, kind: output, shape index: {}]
  %s4 = sld [smem:[#allocation0]]
  $region61: #{tpu_custom_call.1} parent=0
    _
  %s6 = ssub.s32 1, %s4
  %s7 = scalar_select 0, %s6, %s4
  $region1: #{tpu_custom_call.1} parent=0
    #allocation5 [shape = 'u8[8192]{0}', space=vmem, size = 0x2000, scoped, tag = 'input window, operand 0']
    #allocation6 [shape = 's32[2]{0}', space=sflag, size = 0x8, scoped, tag = 'scoped memory for tpu_custom_call.1']
    #allocation7 [shape = 's32[2]{0}', space=sflag, size = 0x8, scoped, tag = 'scoped memory for tpu_custom_call.1']
    #allocation8 [shape = 'u8[262144]{0}', space=vmem, size = 0x40000, scoped, tag = 'input window, operand 1, single buffered']
    #allocation9 [shape = 's32[1]{0}', space=sflag, size = 0x4, scoped, tag = 'scoped memory for tpu_custom_call.1']
    #allocation10 [shape = 'u8[32768]{0}', space=vmem, size = 0x8000, scoped, tag = 'output window, operand 0']
    %8 = vsyncpa [#allocation6], 0
    %s9 = scalar_lea.sflag [#allocation6], 1
    %10 = vsyncpa %s9, 0
    %11 = vsyncpa [#allocation9], 0
    %12 = vsyncpa [#allocation7], 0
    %s13 = scalar_lea.sflag [#allocation7], 1
    %14 = vsyncpa %s13, 0
    loop: start=0, step=1, limit=4
    $region2: #{tpu_custom_call.1} parent=1 // loop_pre_header
      _
    $region3: #{tpu_custom_call.1} parent=1 // loop_header
      %s16 = sphi 0, %s20
      %p17 = scmp.ge.s32.totalorder %s16, 4
      %s23 = sphi 0, %s35
      %s24 = sphi 0, %s31
      %s25 = sphi 0, %s23
      %s26 = sphi 0, %s24
      %s27 = sphi 0, %s25
      %s28 = sphi 0, %s26
      %s38 = sphi 0, %s40
      %s41 = sphi 0, %s38
      %s42 = sphi 0, %s41
      %s58 = sphi 0, %s42
      %s64 = sphi 0, %s66
      %s67 = sphi 0, %s64
      %s68 = sphi 0, %s67
      %s84 = sphi 0, %s68
      %s90 = sphi 0, %s92
      %s93 = sphi 0, %s90
      %s94 = sphi 0, %s93
      %s110 = sphi 0, %s94
      %s116 = sphi 0, %s118
      %s119 = sphi 0, %s116
      %s120 = sphi 0, %s119
      %s136 = sphi 0, %s120
    $region4: #{tpu_custom_call.1} parent=1 // loop_header_branch
      %19 = sbr.rel (%p17) target = $region8
    $region5: #{tpu_custom_call.1} parent=1 // loop_body
      %s21 = ssub.s32 %s16, 1
      %s22 = ssub.s32 %s16, 2
      %s29 = sadd.s32 1, %s24
      %p30 = scmp.ge.s32.totalorder %s29, 1
      %s31 = scalar_select %p30, 0, %s29
      %s32 = sadd.s32 1, %s23
      %s33 = scalar_select %p30, %s32, %s23
      %p34 = scmp.ge.s32.totalorder %s33, 2
      %s35 = scalar_select %p34, 0, %s33
      %s36 = ssub.s32 %s23, %s35
      %p37 = scmp.eq.s32.totalorder %s36, 0
      %s39 = sadd.s32 %s38, 1
      %s40 = scalar_select %p37, %s38, %s39
      %p43 = pneg %p37
      %p44 = scmp.eq.s32.totalorder %s16, 1
      %p45 = por %p43, %p44
      %p46 = scmp.ne.s32.totalorder %s38, %s41
      %p47 = scmp.eq.s32.totalorder %s16, 0
      %p48 = por %p46, %p47
      %p49 = scmp.ne.s32.totalorder %s38, %s41
      %p50 = scmp.eq.s32.totalorder %s21, 1
      %p51 = por %p49, %p50
      %p52 = scmp.ne.s32.totalorder %s41, %s42
      %p53 = scmp.eq.s32.totalorder %s21, 0
      %p54 = por %p52, %p53
      %p55 = scmp.ne.s32.totalorder %s41, %s42
      %p56 = scmp.eq.s32.totalorder %s22, 1
      %p57 = por %p55, %p56
      %p59 = scmp.ne.s32.totalorder %s42, %s58
      %p60 = scmp.eq.s32.totalorder %s22, 0
      %p61 = por %p59, %p60
      %s62 = ssub.s32 %s24, %s31
      %p63 = scmp.eq.s32.totalorder %s62, 0
      %s65 = sadd.s32 %s64, 1
      %s66 = scalar_select %p63, %s64, %s65
      %p69 = pneg %p63
      %p70 = scmp.eq.s32.totalorder %s16, 1
      %p71 = por %p69, %p70
      %p72 = scmp.ne.s32.totalorder %s64, %s67
      %p73 = scmp.eq.s32.totalorder %s16, 0
      %p74 = por %p72, %p73
      %p75 = scmp.ne.s32.totalorder %s64, %s67
      %p76 = scmp.eq.s32.totalorder %s21, 1
      %p77 = por %p75, %p76
      %p78 = scmp.ne.s32.totalorder %s67, %s68
      %p79 = scmp.eq.s32.totalorder %s21, 0
      %p80 = por %p78, %p79
      %p81 = scmp.ne.s32.totalorder %s67, %s68
      %p82 = scmp.eq.s32.totalorder %s22, 1
      %p83 = por %p81, %p82
      %p85 = scmp.ne.s32.totalorder %s68, %s84
      %p86 = scmp.eq.s32.totalorder %s22, 0
      %p87 = por %p85, %p86
      %s88 = ssub.s32 %s24, %s31
      %p89 = scmp.eq.s32.totalorder %s88, 0
      %s91 = sadd.s32 %s90, 1
      %s92 = scalar_select %p89, %s90, %s91
      %p95 = pneg %p89
      %p96 = scmp.eq.s32.totalorder %s16, 1
      %p97 = por %p95, %p96
      %p98 = scmp.ne.s32.totalorder %s90, %s93
      %p99 = scmp.eq.s32.totalorder %s16, 0
      %p100 = por %p98, %p99
      %p101 = scmp.ne.s32.totalorder %s90, %s93
      %p102 = scmp.eq.s32.totalorder %s21, 1
      %p103 = por %p101, %p102
      %p104 = scmp.ne.s32.totalorder %s93, %s94
      %p105 = scmp.eq.s32.totalorder %s21, 0
      %p106 = por %p104, %p105
      %p107 = scmp.ne.s32.totalorder %s93, %s94
      %p108 = scmp.eq.s32.totalorder %s22, 1
      %p109 = por %p107, %p108
      %p111 = scmp.ne.s32.totalorder %s94, %s110
      %p112 = scmp.eq.s32.totalorder %s22, 0
      %p113 = por %p111, %p112
      %s114 = ssub.s32 %s23, %s35
      %p115 = scmp.eq.s32.totalorder %s114, 0
      %s117 = sadd.s32 %s116, 1
      %s118 = scalar_select %p115, %s116, %s117
      %p121 = pneg %p115
      %p122 = scmp.eq.s32.totalorder %s16, 1
      %p123 = por %p121, %p122
      %p124 = scmp.ne.s32.totalorder %s116, %s119
      %p125 = scmp.eq.s32.totalorder %s16, 0
      %p126 = por %p124, %p125
      %p127 = scmp.ne.s32.totalorder %s116, %s119
      %p128 = scmp.eq.s32.totalorder %s21, 1
      %p129 = por %p127, %p128
      %p130 = scmp.ne.s32.totalorder %s119, %s120
      %p131 = scmp.eq.s32.totalorder %s21, 0
      %p132 = por %p130, %p131
      %p133 = scmp.ne.s32.totalorder %s119, %s120
      %p134 = scmp.eq.s32.totalorder %s22, 1
      %p135 = por %p133, %p134
      %p137 = scmp.ne.s32.totalorder %s120, %s136
      %p138 = scmp.eq.s32.totalorder %s22, 0
      %p139 = por %p137, %p138
      %p140 = scmp.le.s32.totalorder 1, %s16
      %p141 = scmp.lt.s32.totalorder %s16, 3
      %p142 = pnand %p140, %p141
      %p143 = pneg %p142
      // Predicated region
      $region9: #{tpu_custom_call.1} parent=5 // pred_check
        _
      $region10: #{tpu_custom_call.1} parent=5 // pred_check_branch
        %145 = sbr.rel (%p142) target = $region12
      $region11: #{tpu_custom_call.1} parent=5 // pred_region
        %s146 = ssub.s32 %s16, 1
        // Predicated region
        $region13: #{tpu_custom_call.1} parent=11 // pred_check
          %p147 = pneg %p80
        $region14: #{tpu_custom_call.1} parent=11 // pred_check_branch
          %149 = sbr.rel (%p147) target = $region16
        $region15: #{tpu_custom_call.1} parent=11 // pred_region
          %s150 = smul.u32 64, %s26
          %s152 = ssub.s32 8192, 8192
          %153 = vsyncadd [#allocation9], %s152
          %s154 = smul.addr %s150, 128
          %s155 = scalar_lea.hbm %s1, %s154
          %s156 = sshll.u32 [#allocation8], 4
          %s157 = int_to_ptr.vmem [resolvable:$true] %s156
          %162 = dma.hbm_to_vmem [thread:$0]  %s155, 8192, %s157, [#allocation9], 128, 128, 8
        $region16: #{tpu_custom_call.1} parent=11 // pred_fallthru
          _
        // Predicated region
        $region17: #{tpu_custom_call.1} parent=11 // pred_check
          %p163 = pneg %p106
        $region18: #{tpu_custom_call.1} parent=11 // pred_check_branch
          %165 = sbr.rel (%p163) target = $region20
        $region19: #{tpu_custom_call.1} parent=11 // pred_region
          %s166 = smul.u32 4, %s26
          %p167 = scmp.lt.s32.totalorder %s166, 3
          %s168 = scalar_select %p167, %s166, 3
          %s169 = scalar_lea.vmem %s2, %s168
          %s170 = smul.u32 4, %s26
        $region20: #{tpu_custom_call.1} parent=11 // pred_fallthru
          _
      $region12: #{tpu_custom_call.1} parent=5 // pred_fallthru
        _
      %p171 = scmp.lt.s32.totalorder %s16, 2
      // Predicated region
      $region21: #{tpu_custom_call.1} parent=5 // pred_check
        %p172 = pneg %p171
      $region22: #{tpu_custom_call.1} parent=5 // pred_check_branch
        %174 = sbr.rel (%p172) target = $region24
      $region23: #{tpu_custom_call.1} parent=5 // pred_region
        // Predicated region
        $region25: #{tpu_custom_call.1} parent=23 // pred_check
          %p175 = pneg %p48
        $region26: #{tpu_custom_call.1} parent=23 // pred_check_branch
          %177 = sbr.rel (%p175) target = $region28
        $region27: #{tpu_custom_call.1} parent=23 // pred_region
          %s178 = sand.u32 %s38, 1
          %s179 = scalar_lea.sflag [#allocation6], %s178
          %s180 = sand.u32 %s38, 1
          %s181 = smul.addr %s180, 8
          %s182 = scalar_lea.vmem [#allocation5], %s181
          %s184 = ssub.s32 128, 128
          %185 = vsyncadd %s179, %s184
          %s186 = smul.addr %s23, 128
          %s187 = scalar_lea.hbm %s0, %s186
          %s189 = sshll.u32 %s182, 4
          %s190 = int_to_ptr.vmem [resolvable:$true] %s189
          %192 = dma.hbm_to_vmem [thread:$0]  %s187, 128, %s190, %s179
        $region28: #{tpu_custom_call.1} parent=23 // pred_fallthru
          _
      $region24: #{tpu_custom_call.1} parent=5 // pred_fallthru
        _
      %p193 = scmp.le.s32.totalorder 1, %s16
      %p194 = scmp.lt.s32.totalorder %s16, 3
      %p195 = pnand %p193, %p194
      %p196 = pneg %p195
      // Predicated region
      $region29: #{tpu_custom_call.1} parent=5 // pred_check
        _
      $region30: #{tpu_custom_call.1} parent=5 // pred_check_branch
        %198 = sbr.rel (%p195) target = $region32
      $region31: #{tpu_custom_call.1} parent=5 // pred_region
        %s199 = ssub.s32 %s16, 1
        %s200 = sand.u32 %s41, 1
        %s201 = scalar_lea.sflag [#allocation6], %s200
        %s202 = sand.u32 %s41, 1
        %s203 = smul.addr %s202, 8
        %s204 = scalar_lea.vmem [#allocation5], %s203
        // Predicated region
        $region33: #{tpu_custom_call.1} parent=31 // pred_check
          %p205 = pneg %p54
        $region34: #{tpu_custom_call.1} parent=31 // pred_check_branch
          %207 = sbr.rel (%p205) target = $region36
        $region35: #{tpu_custom_call.1} parent=31 // pred_region
          %208 = dma.done %s201, 128
        $region36: #{tpu_custom_call.1} parent=31 // pred_fallthru
          _
        // Predicated region
        $region37: #{tpu_custom_call.1} parent=31 // pred_check
          %p209 = pneg %p80
        $region38: #{tpu_custom_call.1} parent=31 // pred_check_branch
          %211 = sbr.rel (%p209) target = $region40
        $region39: #{tpu_custom_call.1} parent=31 // pred_region
          %212 = dma.done [#allocation9], 8192
        $region40: #{tpu_custom_call.1} parent=31 // pred_fallthru
          _
        %s213 = sand.u32 %s41, 1
        %s214 = scalar_lea.sflag [#allocation6], %s213
        %s215 = sand.u32 %s41, 1
        %s216 = smul.addr %s215, 8
        %s217 = scalar_lea.vmem [#allocation5], %s216
        %p218 = pneg %p54
        %p219 = pneg %p51
        %p220 = pneg %p80
        %p221 = pneg %p77
        %s222 = smul.u32 4, %s26
        %p223 = scmp.lt.s32.totalorder %s222, 3
        %s224 = scalar_select %p223, %s222, 3
        %s225 = scalar_lea.vmem %s2, %s224
        %p226 = pneg %p106
        %p227 = pneg %p103
        %p228 = pneg %p132
        %p229 = pneg %p129
        %s230 = sand.u32 %s119, 1
        %s231 = scalar_lea.sflag [#allocation7], %s230
        %s232 = sand.u32 %s119, 1
        %s233 = smul.addr %s232, 32
        %s234 = scalar_lea.vmem [#allocation10], %s233
        %s235 = smul.u32 64, %s26
        %s236 = smul.u32 4, %s26
        %p237 = scmp.lt.s32.totalorder %s236, 3
        %s238 = scalar_select %p237, %s236, 3
        %s239 = scalar_lea.vmem %s2, %s238
        %s240 = smul.u32 4, %s26
        %p241 = scmp.eq.s32.totalorder %s26, 0
        // Predicated region
        $region41: #{tpu_custom_call.1} parent=31 // pred_check
          %p242 = pneg %p241
        $region42: #{tpu_custom_call.1} parent=31 // pred_check_branch
          %244 = sbr.rel (%p242) target = $region44
        $region43: #{tpu_custom_call.1} parent=31 // pred_region
          %vm245 = vcmask 7168
          %246 = vst.msk [vmem:[#allocation3] sm:$0xff] %vm245, -1e+30
          %247 = vst.msk [vmem:[#allocation4] sm:$0xff] %vm245, 0.0
        $region44: #{tpu_custom_call.1} parent=31 // pred_fallthru
          _
        %v248 = vld [vmem:[%s204] sm:$0xff]
        %v249 = vld [vmem:[#allocation8] sm:$0xff]
        %v250 = vld [vmem:[#allocation8 + $0x8] sm:$0xff]
        %v251 = vld [vmem:[#allocation8 + $0x10] sm:$0xff]
        %v252 = vld [vmem:[#allocation8 + $0x18] sm:$0xff]
        %v253 = vld [vmem:[#allocation8 + $0x20] sm:$0xff]
        %v254 = vld [vmem:[#allocation8 + $0x28] sm:$0xff]
        %v255 = vld [vmem:[#allocation8 + $0x30] sm:$0xff]
        %v256 = vld [vmem:[#allocation8 + $0x38] sm:$0xff]
        %v257 = vld [vmem:[#allocation8 + $0x40] sm:$0xff]
        %v258 = vld [vmem:[#allocation8 + $0x48] sm:$0xff]
        %v259 = vld [vmem:[#allocation8 + $0x50] sm:$0xff]
        %v260 = vld [vmem:[#allocation8 + $0x58] sm:$0xff]
        %v261 = vld [vmem:[#allocation8 + $0x60] sm:$0xff]
        %v262 = vld [vmem:[#allocation8 + $0x68] sm:$0xff]
        %v263 = vld [vmem:[#allocation8 + $0x70] sm:$0xff]
        %v264 = vld [vmem:[#allocation8 + $0x78] sm:$0xff]
        %v265 = vld [vmem:[#allocation8 + $0x80] sm:$0xff]
        %v266 = vld [vmem:[#allocation8 + $0x88] sm:$0xff]
        %v267 = vld [vmem:[#allocation8 + $0x90] sm:$0xff]
        %v268 = vld [vmem:[#allocation8 + $0x98] sm:$0xff]
        %v269 = vld [vmem:[#allocation8 + $0xa0] sm:$0xff]
        %v270 = vld [vmem:[#allocation8 + $0xa8] sm:$0xff]
        %v271 = vld [vmem:[#allocation8 + $0xb0] sm:$0xff]
        %v272 = vld [vmem:[#allocation8 + $0xb8] sm:$0xff]
        %v273 = vld [vmem:[#allocation8 + $0xc0] sm:$0xff]
        %v274 = vld [vmem:[#allocation8 + $0xc8] sm:$0xff]
        %v275 = vld [vmem:[#allocation8 + $0xd0] sm:$0xff]
        %v276 = vld [vmem:[#allocation8 + $0xd8] sm:$0xff]
        %v277 = vld [vmem:[#allocation8 + $0xe0] sm:$0xff]
        %v278 = vld [vmem:[#allocation8 + $0xe8] sm:$0xff]
        %v279 = vld [vmem:[#allocation8 + $0xf0] sm:$0xff]
        %v280 = vld [vmem:[#allocation8 + $0xf8] sm:$0xff]
        %v281 = vld [vmem:[#allocation8 + $0x100] sm:$0xff]
        %v282 = vld [vmem:[#allocation8 + $0x108] sm:$0xff]
        %v283 = vld [vmem:[#allocation8 + $0x110] sm:$0xff]
        %v284 = vld [vmem:[#allocation8 + $0x118] sm:$0xff]
        %v285 = vld [vmem:[#allocation8 + $0x120] sm:$0xff]
        %v286 = vld [vmem:[#allocation8 + $0x128] sm:$0xff]
        %v287 = vld [vmem:[#allocation8 + $0x130] sm:$0xff]
        %v288 = vld [vmem:[#allocation8 + $0x138] sm:$0xff]
        %v289 = vld [vmem:[#allocation8 + $0x140] sm:$0xff]
        %v290 = vld [vmem:[#allocation8 + $0x148] sm:$0xff]
        %v291 = vld [vmem:[#allocation8 + $0x150] sm:$0xff]
        %v292 = vld [vmem:[#allocation8 + $0x158] sm:$0xff]
        %v293 = vld [vmem:[#allocation8 + $0x160] sm:$0xff]
        %v294 = vld [vmem:[#allocation8 + $0x168] sm:$0xff]
        %v295 = vld [vmem:[#allocation8 + $0x170] sm:$0xff]
        %v296 = vld [vmem:[#allocation8 + $0x178] sm:$0xff]
        %v297 = vld [vmem:[#allocation8 + $0x180] sm:$0xff]
        %v298 = vld [vmem:[#allocation8 + $0x188] sm:$0xff]
        %v299 = vld [vmem:[#allocation8 + $0x190] sm:$0xff]
        %v300 = vld [vmem:[#allocation8 + $0x198] sm:$0xff]
        %v301 = vld [vmem:[#allocation8 + $0x1a0] sm:$0xff]
        %v302 = vld [vmem:[#allocation8 + $0x1a8] sm:$0xff]
        %v303 = vld [vmem:[#allocation8 + $0x1b0] sm:$0xff]
        %v304 = vld [vmem:[#allocation8 + $0x1b8] sm:$0xff]
        %v305 = vld [vmem:[#allocation8 + $0x1c0] sm:$0xff]
        %v306 = vld [vmem:[#allocation8 + $0x1c8] sm:$0xff]
        %v307 = vld [vmem:[#allocation8 + $0x1d0] sm:$0xff]
        %v308 = vld [vmem:[#allocation8 + $0x1d8] sm:$0xff]
        %v309 = vld [vmem:[#allocation8 + $0x1e0] sm:$0xff]
        %v310 = vld [vmem:[#allocation8 + $0x1e8] sm:$0xff]
        %v311 = vld [vmem:[#allocation8 + $0x1f0] sm:$0xff]
        %v312 = vld [vmem:[#allocation8 + $0x1f8] sm:$0xff]
        %v313 = vld [vmem:[%s239] sm:$0xf]
        %v315 = vlaneseq
        %v316 = vshrl.u32 %v315, 7
        %v317 = vsub.s32 0, %v316
        %v318 = vrot.slane %v313, %v317
        %v319 = vlaneseq
        %v320 = vshrl.u32 %v319, 7
        %v321 = vsub.s32 1, %v320
        %v322 = vrot.slane %v313, %v321
        %v323 = vlaneseq
        %v324 = vshrl.u32 %v323, 7
        %v325 = vsub.s32 2, %v324
        %v326 = vrot.slane %v313, %v325
        %v327 = vlaneseq
        %v328 = vshrl.u32 %v327, 7
        %v329 = vsub.s32 3, %v328
        %v330 = vrot.slane %v313, %v329
        %335 = vmatprep.subr.mxu0 0.0
        %336 = vmatpush1.xpose.msra.mxu0 %v249
        %337 = vmatprep.subr.mxu0 0.0
        %338 = vmatpush1.xpose.msra.mxu0 %v250
        %339 = vmatprep.subr.mxu0 0.0
        %340 = vmatpush1.xpose.msra.mxu0 %v251
        %341 = vmatprep.subr.mxu0 0.0
        %342 = vmatpush1.xpose.msra.mxu0 %v252
        %343 = vmatprep.subr.mxu0 0.0
        %344 = vmatpush1.xpose.msra.mxu0 %v253
        %345 = vmatprep.subr.mxu0 0.0
        %346 = vmatpush1.xpose.msra.mxu0 %v254
        %347 = vmatprep.subr.mxu0 0.0
        %348 = vmatpush1.xpose.msra.mxu0 %v255
        %349 = vmatprep.subr.mxu0 0.0
        %350 = vmatpush1.xpose.msra.mxu0 %v256
        %351 = vmatprep.subr.mxu0 0.0
        %352 = vmatpush1.xpose.msra.mxu0 %v257
        %353 = vmatprep.subr.mxu0 0.0
        %354 = vmatpush1.xpose.msra.mxu0 %v258
        %355 = vmatprep.subr.mxu0 0.0
        %356 = vmatpush1.xpose.msra.mxu0 %v259
        %357 = vmatprep.subr.mxu0 0.0
        %358 = vmatpush1.xpose.msra.mxu0 %v260
        %359 = vmatprep.subr.mxu0 0.0
        %360 = vmatpush1.xpose.msra.mxu0 %v261
        %361 = vmatprep.subr.mxu0 0.0
        %362 = vmatpush1.xpose.msra.mxu0 %v262
        %363 = vmatprep.subr.mxu0 0.0
        %364 = vmatpush1.xpose.msra.mxu0 %v263
        %365 = vmatprep.subr.mxu0 0.0
        %366 = vmatpush1.xpose.msra.mxu0 %v264
        %367 = vmatprep.subr.mxu0 0.0
        %368 = vmatpush1.xpose.msra.mxu0 %v265
        %369 = vmatprep.subr.mxu0 0.0
        %370 = vmatpush1.xpose.msra.mxu0 %v266
        %371 = vmatprep.subr.mxu0 0.0
        %372 = vmatpush1.xpose.msra.mxu0 %v267
        %373 = vmatprep.subr.mxu0 0.0
        %374 = vmatpush1.xpose.msra.mxu0 %v268
        %375 = vmatprep.subr.mxu0 0.0
        %376 = vmatpush1.xpose.msra.mxu0 %v269
        %377 = vmatprep.subr.mxu0 0.0
        %378 = vmatpush1.xpose.msra.mxu0 %v270
        %379 = vmatprep.subr.mxu0 0.0
        %380 = vmatpush1.xpose.msra.mxu0 %v271
        %381 = vmatprep.subr.mxu0 0.0
        %382 = vmatpush1.xpose.msra.mxu0 %v272
        %383 = vmatprep.subr.mxu0 0.0
        %384 = vmatpush1.xpose.msra.mxu0 %v273
        %385 = vmatprep.subr.mxu0 0.0
        %386 = vmatpush1.xpose.msra.mxu0 %v274
        %387 = vmatprep.subr.mxu0 0.0
        %388 = vmatpush1.xpose.msra.mxu0 %v275
        %389 = vmatprep.subr.mxu0 0.0
        %390 = vmatpush1.xpose.msra.mxu0 %v276
        %391 = vmatprep.subr.mxu0 0.0
        %392 = vmatpush1.xpose.msra.mxu0 %v277
        %393 = vmatprep.subr.mxu0 0.0
        %394 = vmatpush1.xpose.msra.mxu0 %v278
        %395 = vmatprep.subr.mxu0 0.0
        %396 = vmatpush1.xpose.msra.mxu0 %v279
        %397 = vmatprep.subr.mxu0 0.0
        %398 = vmatpush1.xpose.msra.mxu0 %v280
        %399 = vmatprep.mubr.f32.mxu0 0.0
        %400 = vmatmul.mubr.f32.gmra.mrb[0].mxu0 %v248
        %v401 = vpop.f32.mrb[0].mxu0
        %v402 = vadd.f32 %v318, %v401
        %v403 = vpop.f32.mrb[0].mxu0
        %v404 = vadd.f32 %v322, %v403
        %405 = vdwg.mxu0
        %406 = vmatprep.subr.mxu0 0.0
        %407 = vmatpush1.xpose.msra.mxu0 %v281
        %408 = vmatprep.subr.mxu0 0.0
        %409 = vmatpush1.xpose.msra.mxu0 %v282
        %410 = vmatprep.subr.mxu0 0.0
        %411 = vmatpush1.xpose.msra.mxu0 %v283
        %412 = vmatprep.subr.mxu0 0.0
        %413 = vmatpush1.xpose.msra.mxu0 %v284
        %414 = vmatprep.subr.mxu0 0.0
        %415 = vmatpush1.xpose.msra.mxu0 %v285
        %416 = vmatprep.subr.mxu0 0.0
        %417 = vmatpush1.xpose.msra.mxu0 %v286
        %418 = vmatprep.subr.mxu0 0.0
        %419 = vmatpush1.xpose.msra.mxu0 %v287
        %420 = vmatprep.subr.mxu0 0.0
        %421 = vmatpush1.xpose.msra.mxu0 %v288
        %422 = vmatprep.subr.mxu0 0.0
        %423 = vmatpush1.xpose.msra.mxu0 %v289
        %424 = vmatprep.subr.mxu0 0.0
        %425 = vmatpush1.xpose.msra.mxu0 %v290
        %426 = vmatprep.subr.mxu0 0.0
        %427 = vmatpush1.xpose.msra.mxu0 %v291
        %428 = vmatprep.subr.mxu0 0.0
        %429 = vmatpush1.xpose.msra.mxu0 %v292
        %430 = vmatprep.subr.mxu0 0.0
        %431 = vmatpush1.xpose.msra.mxu0 %v293
        %432 = vmatprep.subr.mxu0 0.0
        %433 = vmatpush1.xpose.msra.mxu0 %v294
        %434 = vmatprep.subr.mxu0 0.0
        %435 = vmatpush1.xpose.msra.mxu0 %v295
        %436 = vmatprep.subr.mxu0 0.0
        %437 = vmatpush1.xpose.msra.mxu0 %v296
        %438 = vmatprep.subr.mxu0 0.0
        %439 = vmatpush1.xpose.msra.mxu0 %v297
        %440 = vmatprep.subr.mxu0 0.0
        %441 = vmatpush1.xpose.msra.mxu0 %v298
        %442 = vmatprep.subr.mxu0 0.0
        %443 = vmatpush1.xpose.msra.mxu0 %v299
        %444 = vmatprep.subr.mxu0 0.0
        %445 = vmatpush1.xpose.msra.mxu0 %v300
        %446 = vmatprep.subr.mxu0 0.0
        %447 = vmatpush1.xpose.msra.mxu0 %v301
        %448 = vmatprep.subr.mxu0 0.0
        %449 = vmatpush1.xpose.msra.mxu0 %v302
        %450 = vmatprep.subr.mxu0 0.0
        %451 = vmatpush1.xpose.msra.mxu0 %v303
        %452 = vmatprep.subr.mxu0 0.0
        %453 = vmatpush1.xpose.msra.mxu0 %v304
        %454 = vmatprep.subr.mxu0 0.0
        %455 = vmatpush1.xpose.msra.mxu0 %v305
        %456 = vmatprep.subr.mxu0 0.0
        %457 = vmatpush1.xpose.msra.mxu0 %v306
        %458 = vmatprep.subr.mxu0 0.0
        %459 = vmatpush1.xpose.msra.mxu0 %v307
        %460 = vmatprep.subr.mxu0 0.0
        %461 = vmatpush1.xpose.msra.mxu0 %v308
        %462 = vmatprep.subr.mxu0 0.0
        %463 = vmatpush1.xpose.msra.mxu0 %v309
        %464 = vmatprep.subr.mxu0 0.0
        %465 = vmatpush1.xpose.msra.mxu0 %v310
        %466 = vmatprep.subr.mxu0 0.0
        %467 = vmatpush1.xpose.msra.mxu0 %v311
        %468 = vmatprep.subr.mxu0 0.0
        %469 = vmatpush1.xpose.msra.mxu0 %v312
        %470 = vmatprep.mubr.f32.mxu0 0.0
        %471 = vmatmul.mubr.f32.gmra.mrb[0].mxu0 %v248
        %v472 = vpop.f32.mrb[0].mxu0
        %v473 = vadd.f32 %v326, %v472
        %v474 = vpop.f32.mrb[0].mxu0
        %v475 = vadd.f32 %v330, %v474
        %476 = vdwg.mxu0
        %v477 = vld [vmem:[#allocation3] sm:$0xff]
        %v478 = vmax.f32 %v402, %v404
        %v479 = vmax.f32 %v473, %v475
        %v480 = vmax.f32 %v478, %v479
        %481 = vmax.xlane.f32.xlu0 %v480
        %v482 = vpop.xlane.xlu0 %481
        %v483 = vmax.f32 %v477, %v482
        %v484 = vld [vmem:[#allocation4] sm:$0xff]
        %v485 = vsub.f32 %v477, %v483
        %v486 = vmul.f32 %v485, 1.442695
        %v487 = vpow.pop %v486
        %v488 = vmul.f32 %v484, %v487
        %490 = vset.pattern.permute.xlu0 0
        %491 = vperm.xlu0 %490, %v483
        %v492 = vpop.permute.xlu0 %491
        %v494 = vsub.f32 %v402, %v492
        %v495 = vsub.f32 %v404, %v492
        %v496 = vsub.f32 %v473, %v492
        %v497 = vsub.f32 %v475, %v492
        %v498 = vmul.f32 %v494, 1.442695
        %v499 = vpow.pop %v498
        %v500 = vmul.f32 %v495, 1.442695
        %v501 = vpow.pop %v500
        %v502 = vmul.f32 %v496, 1.442695
        %v503 = vpow.pop %v502
        %v504 = vmul.f32 %v497, 1.442695
        %v505 = vpow.pop %v504
        %v506 = vadd.f32 %v499, %v501
        %v507 = vadd.f32 %v506, %v503
        %v508 = vadd.f32 %v507, %v505
        %509 = vadd.xlane.f32.xlu0 %v508
        %v510 = vpop.xlane.xlu0 %509
        %v511 = vadd.f32 %v488, %v510
        %vm512 = vcmask 7168
        %513 = vst.msk [vmem:[#allocation4] sm:$0xff] %vm512, %v511
        %514 = vst.msk [vmem:[#allocation3] sm:$0xff] %vm512, %v483
        %s515 = smul.u32 %s26, 4
        %s516 = smul.addr %s515, 8
        %s517 = scalar_lea.vmem [#allocation2], %s516
        %518 = vst [vmem:[%s517] sm:$0xff] %v402
        %519 = vst [vmem:[%s517 + $0x8] sm:$0xff] %v404
        %520 = vst [vmem:[%s517 + $0x10] sm:$0xff] %v473
        %521 = vst [vmem:[%s517 + $0x18] sm:$0xff] %v475
        // Predicated region
        $region45: #{tpu_custom_call.1} parent=31 // pred_check
          %p522 = pneg %p241
        $region46: #{tpu_custom_call.1} parent=31 // pred_check_branch
          %524 = sbr.rel (%p522) target = $region48
        $region47: #{tpu_custom_call.1} parent=31 // pred_region
          %v525 = vld [vmem:[#allocation3] sm:$0xff]
          %v526 = vld [vmem:[#allocation4] sm:$0xff]
          %v527 = vlog2.pop %v526
          %v528 = vmul.f32 %v527, 0.6931472
          %v529 = vadd.f32 %v525, %v528
          %v530 = vld [vmem:[#allocation2] sm:$0xff]
          %v531 = vld [vmem:[#allocation2 + $0x8] sm:$0xff]
          %v532 = vld [vmem:[#allocation2 + $0x10] sm:$0xff]
          %v533 = vld [vmem:[#allocation2 + $0x18] sm:$0xff]
          %535 = vset.pattern.permute.xlu0 0
          %536 = vperm.xlu0 %535, %v529
          %v537 = vpop.permute.xlu0 %536
          %v539 = vsub.f32 %v530, %v537
          %v540 = vsub.f32 %v531, %v537
          %v541 = vsub.f32 %v532, %v537
          %v542 = vsub.f32 %v533, %v537
          %543 = vst [vmem:[%s234] sm:$0xff] %v539
          %544 = vst [vmem:[%s234 + $0x8] sm:$0xff] %v540
          %545 = vst [vmem:[%s234 + $0x10] sm:$0xff] %v541
          %546 = vst [vmem:[%s234 + $0x18] sm:$0xff] %v542
        $region48: #{tpu_custom_call.1} parent=31 // pred_fallthru
          _
        %s547 = sand.u32 %s119, 1
        %s548 = scalar_lea.sflag [#allocation7], %s547
        %s549 = sand.u32 %s119, 1
        %s550 = smul.addr %s549, 32
        %s551 = scalar_lea.vmem [#allocation10], %s550
        // Predicated region
        $region49: #{tpu_custom_call.1} parent=31 // pred_check
          %p552 = pneg %p129
        $region50: #{tpu_custom_call.1} parent=31 // pred_check_branch
          %554 = sbr.rel (%p552) target = $region52
        $region51: #{tpu_custom_call.1} parent=31 // pred_region
          %s556 = ssub.s32 512, 512
          %557 = vsyncadd %s548, %s556
          %s558 = smul.addr %s25, 4
          %s559 = smul.addr %s558, 128
          %s560 = scalar_lea.hbm %s3, %s559
          %s562 = sshll.u32 %s551, 4
          %s563 = int_to_ptr.vmem [resolvable:$true] %s562
          %565 = dma.vmem_to_hbm [thread:$0]  %s563, 512, %s560, %s548
        $region52: #{tpu_custom_call.1} parent=31 // pred_fallthru
          _
      $region32: #{tpu_custom_call.1} parent=5 // pred_fallthru
        _
      %p566 = scmp.le.s32.totalorder 2, %s16
      // Predicated region
      $region53: #{tpu_custom_call.1} parent=5 // pred_check
        %p567 = pneg %p566
      $region54: #{tpu_custom_call.1} parent=5 // pred_check_branch
        %569 = sbr.rel (%p567) target = $region56
      $region55: #{tpu_custom_call.1} parent=5 // pred_region
        %s570 = ssub.s32 %s16, 2
        // Predicated region
        $region57: #{tpu_custom_call.1} parent=55 // pred_check
          %p571 = pneg %p135
        $region58: #{tpu_custom_call.1} parent=55 // pred_check_branch
          %573 = sbr.rel (%p571) target = $region60
        $region59: #{tpu_custom_call.1} parent=55 // pred_region
          %s574 = sand.u32 %s120, 1
          %s575 = scalar_lea.sflag [#allocation7], %s574
          %s576 = sand.u32 %s120, 1
          %s577 = smul.addr %s576, 32
          %s578 = scalar_lea.vmem [#allocation10], %s577
          %579 = dma.done %s575, 512
        $region60: #{tpu_custom_call.1} parent=55 // pred_fallthru
          _
      $region56: #{tpu_custom_call.1} parent=5 // pred_fallthru
        _
    $region6: #{tpu_custom_call.1} parent=1 // loop_footer
      %s20 = sadd.s32 1, %s16
    $region7: #{tpu_custom_call.1} parent=1 // loop_footer_branch
      %15 = sbr.rel target = $region3
    $region8: #{tpu_custom_call.1} parent=1 // loop_exit
      _
    %580 = vsyncpa [#allocation6], 1
    %s581 = scalar_lea.sflag [#allocation6], 1
    %582 = vsyncpa %s581, 1
    %583 = vsyncpa [#allocation9], 1
    %584 = vsyncpa [#allocation7], 1
    %s585 = scalar_lea.sflag [#allocation7], 1
    %586 = vsyncpa %s585, 1

</llo_original>
